<compile_context>
chip_gen: v6e
topology: v6e:2x2x1
jax: 0.10.0
libtpu: 0.0.40
codegen_flags: <defaults>
</compile_context>

<pallas_src>
import jax
import jax.numpy as jnp
from jax.experimental import pallas as pl
from jax.experimental.pallas import tpu as pltpu

LANES = 128
SUBLANES = 8
MAX_TR = 1024      # rows per grid step -> 512 KiB f32 tile (x2 pipeline buffers)
NUM_SHARDS = 2     # leading "parallel" axis: both TCs on v7x, harmless on 1-TC chips


def _lp_kernel(x_ref, out_ref, acc_ref):
    i = pl.program_id(1)

    # Zero the per-shard vector accumulator at the start of each shard.
    @pl.when(i == 0)
    def _():
        acc_ref[...] = jnp.zeros_like(acc_ref)

    a = jnp.abs(x_ref[...].astype(jnp.float32))
    # |a| ** 0.7 == exp(0.7 * log(a)): one vlog + one vexp per vreg (EUP slot).
    # The compare+select guard for the padding zeros is free VPU filler.
    pos = a > 0.0
    v = jnp.where(pos, jnp.exp(0.7 * jnp.log(jnp.where(pos, a, 1.0))), 0.0)

    # vreg-shaped partial accumulation: pure VPU adds each step, no per-step
    # XLU cross-lane/sublane reduce.  (tr, 128) -> (tr//8, 8, 128) is along
    # native f32 vreg tiles, so the reshape is layout-free.
    acc_ref[...] += v.reshape(-1, SUBLANES, LANES).sum(axis=0)

    # Lane-dense writeback once per shard; the tiny final reduce happens in JAX.
    @pl.when(i == pl.num_programs(1) - 1)
    def _():
        out_ref[...] = acc_ref[...].reshape(1, SUBLANES, LANES)


def _pack_params(params):
    """Flatten + concat + zero-pad all parameters into a lane-dense (R, 128) slab.

    Keeps the parameters' own dtype when uniform (cast to f32 happens inside the
    kernel, accumulation is always f32), so e.g. a bf16 model moves half the
    HBM bytes.  |0|**0.7 == 0, so zero padding contributes nothing.
    """
    # TODO(synk): for very large models, pass parameters as separate in_specs
    # (or one pallas_call per parameter) to avoid the concat HBM round-trip.
    dtypes = {jnp.dtype(p.dtype) for p in params}
    slab_dtype = params[0].dtype if len(dtypes) == 1 else jnp.float32
    flat = jnp.concatenate(
        [jnp.reshape(p, (-1,)).astype(slab_dtype) for p in params]
    )
    n = flat.shape[0]
    rows = -(-n // LANES)
    rows = -(-rows // 32) * 32                     # dtype-safe sublane alignment
    tr = min(MAX_TR, rows)                         # adapt the tile to small models
    rows = -(-rows // (NUM_SHARDS * tr)) * (NUM_SHARDS * tr)
    flat = jnp.pad(flat, (0, rows * LANES - n))
    return flat.reshape(rows, LANES), tr


def lp_regular(params, p=0.1):
    """JAX/Pallas equivalent of Lp_Regular()(model)."""
    del p  # the reference forward hard-codes the 0.7 exponent; ctor's p is unused
    x, tr = _pack_params(params)
    rows = x.shape[0]
    blocks_per_shard = rows // (NUM_SHARDS * tr)

    partials = pl.pallas_call(
        _lp_kernel,
        out_shape=jax.ShapeDtypeStruct((NUM_SHARDS, SUBLANES, LANES), jnp.float32),
        grid_spec=pltpu.PrefetchScalarGridSpec(
            num_scalar_prefetch=0,
            grid=(NUM_SHARDS, blocks_per_shard),
            in_specs=[
                pl.BlockSpec(
                    (tr, LANES),
                    lambda c, i: (c * blocks_per_shard + i, 0),
                )
            ],
            out_specs=pl.BlockSpec(
                (1, SUBLANES, LANES), lambda c, i: (c, 0, 0)
            ),
            scratch_shapes=[pltpu.VMEM((SUBLANES, LANES), jnp.float32)],
        ),
        compiler_params=pltpu.CompilerParams(
            dimension_semantics=("parallel", "arbitrary")
        ),
    )(x)
    # One tiny (2, 8, 128) reduce; .mean() of a scalar == the scalar.
    return jnp.sum(partials)


if __name__ == "__main__":
    # Deterministic synthetic "model parameters" (a tiny conv + linear stack):
    #   conv weight (4, 4, 3, 3), conv bias (4,), fc weight (32, 64), fc bias (32,)
    key = jax.random.PRNGKey(0)
    k1, k2, k3, k4 = jax.random.split(key, 4)
    params = [
        jax.random.normal(k1, (4, 4, 3, 3), dtype=jnp.float32) * 0.1,
        jax.random.normal(k2, (4,), dtype=jnp.float32) * 0.1,
        jax.random.normal(k3, (32, 64), dtype=jnp.float32) * 0.1,
        jax.random.normal(k4, (32,), dtype=jnp.float32) * 0.1,
    ]

    loss = jax.block_until_ready(lp_regular(params))

    # Pure-JAX reference check.
    ref = sum(jnp.sum(jnp.abs(p) ** 0.7) for p in params)
    assert jnp.allclose(loss, ref, rtol=1e-4, atol=1e-4), (loss, ref)

    print("KERNEL_OK")
</pallas_src>

<mosaic_0001>
module attributes {stable_mosaic.version = 11 : i64} {
  func.func @_lp_kernel(%arg0: i32, %arg1: i32, %arg2: memref<32x128xf32, #tpu.memory_space<vmem>>, %arg3: memref<1x8x128xf32, #tpu.memory_space<vmem>>, %arg4: memref<8x128xf32, #tpu.memory_space<vmem>>) attributes {dimension_semantics = [#tpu.dimension_semantics<parallel>, #tpu.dimension_semantics<arbitrary>], iteration_bounds = array<i64: 2, 1>, scalar_prefetch = 0 : i64, scratch_operands = 1 : i64, tpu.core_type = #tpu.core_type<tc>, window_params = [{transform_indices = @transform_0, window_bounds = array<i64: 32, 128>}, {transform_indices = @transform_1, window_bounds = array<i64: 1, 8, 128>}]} {
    %c0_i32 = arith.constant 0 : i32
    %0 = arith.cmpi eq, %arg1, %c0_i32 : i32
    %1 = arith.extui %0 : i1 to i32
    %c0_i32_0 = arith.constant 0 : i32
    %2 = arith.cmpi ne, %1, %c0_i32_0 : i32
    scf.if %2 {
      %cst_12 = arith.constant 0.000000e+00 : f32
      %23 = vector.broadcast %cst_12 : f32 to vector<8x128xf32>
      %c0_13 = arith.constant 0 : index
      %c0_14 = arith.constant 0 : index
      %24 = vector.load %arg4[%c0_13, %c0_14] : memref<8x128xf32, #tpu.memory_space<vmem>>, vector<8x128xf32>
      tpu.vector_store %arg4[%c0_13, %c0_14], %23 {strides = array<i32>} : memref<8x128xf32, #tpu.memory_space<vmem>>, vector<8x128xf32>,
    } else {
    }
    %c0 = arith.constant 0 : index
    %c0_1 = arith.constant 0 : index
    %3 = vector.load %arg2[%c0, %c0_1] : memref<32x128xf32, #tpu.memory_space<vmem>>, vector<32x128xf32>
    %4 = math.absf %3 : vector<32x128xf32>
    %cst = arith.constant 0.000000e+00 : f32
    %5 = vector.broadcast %cst : f32 to vector<32x128xf32>
    %6 = arith.cmpf ogt, %4, %5 : vector<32x128xf32>
    %cst_2 = arith.constant 1.000000e+00 : f32
    %7 = vector.broadcast %cst_2 : f32 to vector<32x128xf32>
    %8 = arith.select %6, %4, %7 : vector<32x128xi1>, vector<32x128xf32>
    %9 = math.log %8 : vector<32x128xf32>
    %cst_3 = arith.constant 0.699999988 : f32
    %10 = vector.broadcast %cst_3 : f32 to vector<32x128xf32>
    %11 = arith.mulf %10, %9 : vector<32x128xf32>
    %12 = math.exp %11 : vector<32x128xf32>
    %cst_4 = arith.constant 0.000000e+00 : f32
    %13 = vector.broadcast %cst_4 : f32 to vector<32x128xf32>
    %14 = arith.select %6, %12, %13 : vector<32x128xi1>, vector<32x128xf32>
    %c0_5 = arith.constant 0 : index
    %c0_6 = arith.constant 0 : index
    %15 = vector.load %arg4[%c0_5, %c0_6] : memref<8x128xf32, #tpu.memory_space<vmem>>, vector<8x128xf32>
    %16 = vector.shape_cast %14 : vector<32x128xf32> to vector<4x8x128xf32>
    %cst_7 = arith.constant dense<0.000000e+00> : vector<8x128xf32>
    %17 = vector.multi_reduction <add>, %16, %cst_7 [0] : vector<4x8x128xf32> to vector<8x128xf32>
    %18 = arith.addf %15, %17 : vector<8x128xf32>
    %c0_8 = arith.constant 0 : index
    %c0_9 = arith.constant 0 : index
    %19 = vector.load %arg4[%c0_8, %c0_9] : memref<8x128xf32, #tpu.memory_space<vmem>>, vector<8x128xf32>
    tpu.vector_store %arg4[%c0_8, %c0_9], %18 {strides = array<i32>} : memref<8x128xf32, #tpu.memory_space<vmem>>, vector<8x128xf32>,
    %c0_i32_10 = arith.constant 0 : i32
    %20 = arith.cmpi eq, %arg1, %c0_i32_10 : i32
    %21 = arith.extui %20 : i1 to i32
    %c0_i32_11 = arith.constant 0 : i32
    %22 = arith.cmpi ne, %21, %c0_i32_11 : i32
    scf.if %22 {
      %c0_12 = arith.constant 0 : index
      %c0_13 = arith.constant 0 : index
      %23 = vector.load %arg4[%c0_12, %c0_13] : memref<8x128xf32, #tpu.memory_space<vmem>>, vector<8x128xf32>
      %24 = vector.shape_cast %23 : vector<8x128xf32> to vector<1x8x128xf32>
      %c0_14 = arith.constant 0 : index
      %c0_15 = arith.constant 0 : index
      %c0_16 = arith.constant 0 : index
      %25 = vector.load %arg3[%c0_14, %c0_15, %c0_16] : memref<1x8x128xf32, #tpu.memory_space<vmem>>, vector<1x8x128xf32>
      tpu.vector_store %arg3[%c0_14, %c0_15, %c0_16], %24 {strides = array<i32>} : memref<1x8x128xf32, #tpu.memory_space<vmem>>, vector<1x8x128xf32>,
    } else {
    }
    return
  }
  func.func @transform_0(%arg0: i32, %arg1: i32) -> (i32, i32) {
    %c1_i32 = arith.constant 1 : i32
    %0 = arith.muli %arg0, %c1_i32 : i32
    %1 = arith.addi %0, %arg1 : i32
    %c0_i32 = arith.constant 0 : i32
    %c0_i32_0 = arith.constant 0 : i32
    return %1, %c0_i32 : i32, i32
  }
  func.func @transform_1(%arg0: i32, %arg1: i32) -> (i32, i32, i32) {
    %c0_i32 = arith.constant 0 : i32
    %c0_i32_0 = arith.constant 0 : i32
    %c0_i32_1 = arith.constant 0 : i32
    return %arg0, %c0_i32, %c0_i32_0 : i32, i32, i32
  }
}

</mosaic_0001>

<llo_original>
// kernel: tpu_custom_call.1
$region0: #{tpu_custom_call.1}
  #allocation0 [shape = 'u32[]', space=smem, size = 0x4, offset = 0x4, fixed_abs, tag = 'smem constant byte address 0x4 - core index']
  #allocation1 [shape = 'u32[144,128]{1,0:T(1,128)}', space=vmem, size = 0x12000, scoped, tag = 'internal scratch']
  #allocation2 [shape = 'f32[8,128]{1,0:T(8,128)}', space=vmem, size = 0x1000, scoped, tag = 'scratch operand']
  %s0 = inlined_call_operand.hbm [shape: f32[64,128], index: 0, kind: input, shape index: {}]
  %s1 = inlined_call_operand.hbm [shape: f32[2,8,128], index: 1, kind: output, shape index: {}]
  %s2 = sld [smem:[#allocation0]]
  $region49: #{tpu_custom_call.1} parent=0
    _
  %s4 = ssub.s32 1, %s2
  %s5 = scalar_select 0, %s4, %s2
  $region1: #{tpu_custom_call.1} parent=0
    #allocation3 [shape = 'u8[32768]{0}', space=vmem, size = 0x8000, scoped, tag = 'input window, operand 0']
    #allocation4 [shape = 's32[2]{0}', space=sflag, size = 0x8, scoped, tag = 'scoped memory for tpu_custom_call.1']
    #allocation5 [shape = 's32[2]{0}', space=sflag, size = 0x8, scoped, tag = 'scoped memory for tpu_custom_call.1']
    #allocation6 [shape = 'u8[8192]{0}', space=vmem, size = 0x2000, scoped, tag = 'output window, operand 0']
    %6 = vsyncpa [#allocation4], 0
    %s7 = scalar_lea.sflag [#allocation4], 1
    %8 = vsyncpa %s7, 0
    %9 = vsyncpa [#allocation5], 0
    %s10 = scalar_lea.sflag [#allocation5], 1
    %11 = vsyncpa %s10, 0
    loop: start=0, step=1, limit=4
    $region2: #{tpu_custom_call.1} parent=1 // loop_pre_header
      _
    $region3: #{tpu_custom_call.1} parent=1 // loop_header
      %s13 = sphi 0, %s17
      %p14 = scmp.ge.s32.totalorder %s13, 4
      %s20 = sphi 0, %s32
      %s21 = sphi 0, %s28
      %s22 = sphi 0, %s20
      %s23 = sphi 0, %s21
      %s24 = sphi 0, %s22
      %s25 = sphi 0, %s23
      %s37 = sphi 0, %s39
      %s40 = sphi 0, %s37
      %s41 = sphi 0, %s40
      %s57 = sphi 0, %s41
      %s63 = sphi 0, %s65
      %s66 = sphi 0, %s63
      %s67 = sphi 0, %s66
      %s83 = sphi 0, %s67
    $region4: #{tpu_custom_call.1} parent=1 // loop_header_branch
      %16 = sbr.rel (%p14) target = $region8
    $region5: #{tpu_custom_call.1} parent=1 // loop_body
      %s18 = ssub.s32 %s13, 1
      %s19 = ssub.s32 %s13, 2
      %s26 = sadd.s32 1, %s21
      %p27 = scmp.ge.s32.totalorder %s26, 1
      %s28 = scalar_select %p27, 0, %s26
      %s29 = sadd.s32 1, %s20
      %s30 = scalar_select %p27, %s29, %s20
      %p31 = scmp.ge.s32.totalorder %s30, 2
      %s32 = scalar_select %p31, 0, %s30
      %s33 = sadd.s32 %s20, %s21
      %s34 = sadd.s32 %s32, %s28
      %s35 = ssub.s32 %s33, %s34
      %p36 = scmp.eq.s32.totalorder %s35, 0
      %s38 = sadd.s32 %s37, 1
      %s39 = scalar_select %p36, %s37, %s38
      %p42 = pneg %p36
      %p43 = scmp.eq.s32.totalorder %s13, 1
      %p44 = por %p42, %p43
      %p45 = scmp.ne.s32.totalorder %s37, %s40
      %p46 = scmp.eq.s32.totalorder %s13, 0
      %p47 = por %p45, %p46
      %p48 = scmp.ne.s32.totalorder %s37, %s40
      %p49 = scmp.eq.s32.totalorder %s18, 1
      %p50 = por %p48, %p49
      %p51 = scmp.ne.s32.totalorder %s40, %s41
      %p52 = scmp.eq.s32.totalorder %s18, 0
      %p53 = por %p51, %p52
      %p54 = scmp.ne.s32.totalorder %s40, %s41
      %p55 = scmp.eq.s32.totalorder %s19, 1
      %p56 = por %p54, %p55
      %p58 = scmp.ne.s32.totalorder %s41, %s57
      %p59 = scmp.eq.s32.totalorder %s19, 0
      %p60 = por %p58, %p59
      %s61 = ssub.s32 %s20, %s32
      %p62 = scmp.eq.s32.totalorder %s61, 0
      %s64 = sadd.s32 %s63, 1
      %s65 = scalar_select %p62, %s63, %s64
      %p68 = pneg %p62
      %p69 = scmp.eq.s32.totalorder %s13, 1
      %p70 = por %p68, %p69
      %p71 = scmp.ne.s32.totalorder %s63, %s66
      %p72 = scmp.eq.s32.totalorder %s13, 0
      %p73 = por %p71, %p72
      %p74 = scmp.ne.s32.totalorder %s63, %s66
      %p75 = scmp.eq.s32.totalorder %s18, 1
      %p76 = por %p74, %p75
      %p77 = scmp.ne.s32.totalorder %s66, %s67
      %p78 = scmp.eq.s32.totalorder %s18, 0
      %p79 = por %p77, %p78
      %p80 = scmp.ne.s32.totalorder %s66, %s67
      %p81 = scmp.eq.s32.totalorder %s19, 1
      %p82 = por %p80, %p81
      %p84 = scmp.ne.s32.totalorder %s67, %s83
      %p85 = scmp.eq.s32.totalorder %s19, 0
      %p86 = por %p84, %p85
      %p87 = scmp.le.s32.totalorder 1, %s13
      %p88 = scmp.lt.s32.totalorder %s13, 3
      %p89 = pnand %p87, %p88
      %p90 = pneg %p89
      // Predicated region
      $region9: #{tpu_custom_call.1} parent=5 // pred_check
        _
      $region10: #{tpu_custom_call.1} parent=5 // pred_check_branch
        %92 = sbr.rel (%p89) target = $region12
      $region11: #{tpu_custom_call.1} parent=5 // pred_region
        %s93 = ssub.s32 %s13, 1
      $region12: #{tpu_custom_call.1} parent=5 // pred_fallthru
        _
      %p94 = scmp.lt.s32.totalorder %s13, 2
      // Predicated region
      $region13: #{tpu_custom_call.1} parent=5 // pred_check
        %p95 = pneg %p94
      $region14: #{tpu_custom_call.1} parent=5 // pred_check_branch
        %97 = sbr.rel (%p95) target = $region16
      $region15: #{tpu_custom_call.1} parent=5 // pred_region
        // Predicated region
        $region17: #{tpu_custom_call.1} parent=15 // pred_check
          %p98 = pneg %p47
        $region18: #{tpu_custom_call.1} parent=15 // pred_check_branch
          %100 = sbr.rel (%p98) target = $region20
        $region19: #{tpu_custom_call.1} parent=15 // pred_region
          %s101 = sand.u32 %s37, 1
          %s102 = scalar_lea.sflag [#allocation4], %s101
          %s103 = sand.u32 %s37, 1
          %s104 = smul.addr %s103, 32
          %s105 = scalar_lea.vmem [#allocation3], %s104
          %s106 = sadd.s32 %s20, %s21
          %s107 = smul.u32 4, %s106
          %s109 = ssub.s32 512, 512
          %110 = vsyncadd %s102, %s109
          %s111 = smul.addr %s107, 128
          %s112 = scalar_lea.hbm %s0, %s111
          %s113 = sshll.u32 %s105, 4
          %s114 = int_to_ptr.vmem [resolvable:$true] %s113
          %119 = dma.hbm_to_vmem [thread:$0]  %s112, 512, %s114, %s102, 128, 128, 8
        $region20: #{tpu_custom_call.1} parent=15 // pred_fallthru
          _
      $region16: #{tpu_custom_call.1} parent=5 // pred_fallthru
        _
      %p120 = scmp.le.s32.totalorder 1, %s13
      %p121 = scmp.lt.s32.totalorder %s13, 3
      %p122 = pnand %p120, %p121
      %p123 = pneg %p122
      // Predicated region
      $region21: #{tpu_custom_call.1} parent=5 // pred_check
        _
      $region22: #{tpu_custom_call.1} parent=5 // pred_check_branch
        %125 = sbr.rel (%p122) target = $region24
      $region23: #{tpu_custom_call.1} parent=5 // pred_region
        %s126 = ssub.s32 %s13, 1
        %s127 = sand.u32 %s40, 1
        %s128 = scalar_lea.sflag [#allocation4], %s127
        %s129 = sand.u32 %s40, 1
        %s130 = smul.addr %s129, 32
        %s131 = scalar_lea.vmem [#allocation3], %s130
        // Predicated region
        $region25: #{tpu_custom_call.1} parent=23 // pred_check
          %p132 = pneg %p53
        $region26: #{tpu_custom_call.1} parent=23 // pred_check_branch
          %134 = sbr.rel (%p132) target = $region28
        $region27: #{tpu_custom_call.1} parent=23 // pred_region
          %135 = dma.done %s128, 512
        $region28: #{tpu_custom_call.1} parent=23 // pred_fallthru
          _
        %s136 = sand.u32 %s40, 1
        %s137 = scalar_lea.sflag [#allocation4], %s136
        %s138 = sand.u32 %s40, 1
        %s139 = smul.addr %s138, 32
        %s140 = scalar_lea.vmem [#allocation3], %s139
        %p141 = pneg %p53
        %p142 = pneg %p50
        %p143 = pneg %p79
        %p144 = pneg %p76
        %s145 = sand.u32 %s66, 1
        %s146 = scalar_lea.sflag [#allocation5], %s145
        %s147 = sand.u32 %s66, 1
        %s148 = smul.addr %s147, 8
        %s149 = scalar_lea.vmem [#allocation6], %s148
        %s150 = sadd.s32 %s22, %s23
        %s151 = smul.u32 4, %s150
        %p152 = scmp.eq.s32.totalorder %s23, 0
        // Predicated region
        $region29: #{tpu_custom_call.1} parent=23 // pred_check
          %p153 = pneg %p152
        $region30: #{tpu_custom_call.1} parent=23 // pred_check_branch
          %155 = sbr.rel (%p153) target = $region32
        $region31: #{tpu_custom_call.1} parent=23 // pred_region
          %156 = vst [vmem:[#allocation2] sm:$0xff] 0.0
        $region32: #{tpu_custom_call.1} parent=23 // pred_fallthru
          _
        %v157 = vld [vmem:[%s131] sm:$0xff]
        %v158 = vld [vmem:[%s131 + $0x8] sm:$0xff]
        %v159 = vld [vmem:[%s131 + $0x10] sm:$0xff]
        %v160 = vld [vmem:[%s131 + $0x18] sm:$0xff]
        %v161 = vand.u32 2147483647, %v157
        %v162 = vand.u32 2147483647, %v158
        %v163 = vand.u32 2147483647, %v159
        %v164 = vand.u32 2147483647, %v160
        %vm165 = vcmp.gt.f32.partialorder %v161, 0.0
        %vm166 = vcmp.gt.f32.partialorder %v162, 0.0
        %vm167 = vcmp.gt.f32.partialorder %v163, 0.0
        %vm168 = vcmp.gt.f32.partialorder %v164, 0.0
        %v169 = vsel %vm165, %v161, 1.0
        %v170 = vsel %vm166, %v162, 1.0
        %v171 = vsel %vm167, %v163, 1.0
        %v172 = vsel %vm168, %v164, 1.0
        %v173 = vlog2.pop %v169
        %v174 = vmul.f32 %v173, 0.6931472
        %v175 = vlog2.pop %v170
        %v176 = vmul.f32 %v175, 0.6931472
        %v177 = vlog2.pop %v171
        %v178 = vmul.f32 %v177, 0.6931472
        %v179 = vlog2.pop %v172
        %v180 = vmul.f32 %v179, 0.6931472
        %v181 = vmul.f32 %v174, 0.7
        %v182 = vmul.f32 %v176, 0.7
        %v183 = vmul.f32 %v178, 0.7
        %v184 = vmul.f32 %v180, 0.7
        %v185 = vmul.f32 %v181, 1.442695
        %v186 = vpow.pop %v185
        %v187 = vmul.f32 %v182, 1.442695
        %v188 = vpow.pop %v187
        %v189 = vmul.f32 %v183, 1.442695
        %v190 = vpow.pop %v189
        %v191 = vmul.f32 %v184, 1.442695
        %v192 = vpow.pop %v191
        %v193 = vsel %vm165, %v186, 0.0
        %v194 = vsel %vm166, %v188, 0.0
        %v195 = vsel %vm167, %v190, 0.0
        %v196 = vsel %vm168, %v192, 0.0
        %v197 = vld [vmem:[#allocation2] sm:$0xff]
        %v198 = vadd.f32 %v193, %v194
        %v199 = vadd.f32 %v198, %v195
        %v200 = vadd.f32 %v199, %v196
        %v201 = vadd.f32 %v197, %v200
        %202 = vst [vmem:[#allocation2] sm:$0xff] %v201
        // Predicated region
        $region33: #{tpu_custom_call.1} parent=23 // pred_check
          %p203 = pneg %p152
        $region34: #{tpu_custom_call.1} parent=23 // pred_check_branch
          %205 = sbr.rel (%p203) target = $region36
        $region35: #{tpu_custom_call.1} parent=23 // pred_region
          %v206 = vld [vmem:[#allocation2] sm:$0xff]
          %207 = vst [vmem:[%s149] sm:$0xff] %v206
        $region36: #{tpu_custom_call.1} parent=23 // pred_fallthru
          _
        %s208 = sand.u32 %s66, 1
        %s209 = scalar_lea.sflag [#allocation5], %s208
        %s210 = sand.u32 %s66, 1
        %s211 = smul.addr %s210, 8
        %s212 = scalar_lea.vmem [#allocation6], %s211
        // Predicated region
        $region37: #{tpu_custom_call.1} parent=23 // pred_check
          %p213 = pneg %p76
        $region38: #{tpu_custom_call.1} parent=23 // pred_check_branch
          %215 = sbr.rel (%p213) target = $region40
        $region39: #{tpu_custom_call.1} parent=23 // pred_region
          %s217 = ssub.s32 128, 128
          %218 = vsyncadd %s209, %s217
          %s219 = smul.addr %s22, 128
          %s220 = scalar_lea.hbm %s1, %s219
          %s222 = sshll.u32 %s212, 4
          %s223 = int_to_ptr.vmem [resolvable:$true] %s222
          %225 = dma.vmem_to_hbm [thread:$0]  %s223, 128, %s220, %s209
        $region40: #{tpu_custom_call.1} parent=23 // pred_fallthru
          _
      $region24: #{tpu_custom_call.1} parent=5 // pred_fallthru
        _
      %p226 = scmp.le.s32.totalorder 2, %s13
      // Predicated region
      $region41: #{tpu_custom_call.1} parent=5 // pred_check
        %p227 = pneg %p226
      $region42: #{tpu_custom_call.1} parent=5 // pred_check_branch
        %229 = sbr.rel (%p227) target = $region44
      $region43: #{tpu_custom_call.1} parent=5 // pred_region
        %s230 = ssub.s32 %s13, 2
        // Predicated region
        $region45: #{tpu_custom_call.1} parent=43 // pred_check
          %p231 = pneg %p82
        $region46: #{tpu_custom_call.1} parent=43 // pred_check_branch
          %233 = sbr.rel (%p231) target = $region48
        $region47: #{tpu_custom_call.1} parent=43 // pred_region
          %s234 = sand.u32 %s67, 1
          %s235 = scalar_lea.sflag [#allocation5], %s234
          %s236 = sand.u32 %s67, 1
          %s237 = smul.addr %s236, 8
          %s238 = scalar_lea.vmem [#allocation6], %s237
          %239 = dma.done %s235, 128
        $region48: #{tpu_custom_call.1} parent=43 // pred_fallthru
          _
      $region44: #{tpu_custom_call.1} parent=5 // pred_fallthru
        _
    $region6: #{tpu_custom_call.1} parent=1 // loop_footer
      %s17 = sadd.s32 1, %s13
    $region7: #{tpu_custom_call.1} parent=1 // loop_footer_branch
      %12 = sbr.rel target = $region3
    $region8: #{tpu_custom_call.1} parent=1 // loop_exit
      _
    %240 = vsyncpa [#allocation4], 1
    %s241 = scalar_lea.sflag [#allocation4], 1
    %242 = vsyncpa %s241, 1
    %243 = vsyncpa [#allocation5], 1
    %s244 = scalar_lea.sflag [#allocation5], 1
    %245 = vsyncpa %s244, 1

</llo_original>
